<compile_context>
chip_gen: v6e
topology: v6e:2x2x1
jax: 0.10.0
libtpu: 0.0.40
codegen_flags: <defaults>
</compile_context>

<pallas_src>
import jax
import jax.numpy as jnp
from jax.experimental import pallas as pl

K_IN = 1350     # 6 * 15 * 15
H1 = 128
N_OUT = 5
K_PAD = 1408    # 11 * 128 -> lane-aligned, smallest multiple of 128 >= 1351
N_PAD = 128     # lane-dense output width
M_MIN = 8       # sublane width


def _mlp_kernel(x_ref, w1_ref, w2_ref, b2_ref, o_ref):
    # fc1 (+ folded bias): (M, 1408) bf16 @ (1408, 128) bf16 -> f32 accumulate
    h = jnp.dot(x_ref[...], w1_ref[...], preferred_element_type=jnp.float32)
    h = jnp.maximum(h, 0.0).astype(jnp.bfloat16)                 # ReLU, bf16 for MXU
    # fc3: (M, 128) bf16 @ (128, 128) bf16 (zero cols beyond 5) -> f32 accumulate
    out = jnp.dot(h, w2_ref[...], preferred_element_type=jnp.float32)
    o_ref[...] = (out + b2_ref[...]).astype(o_ref.dtype)


def pack_params(w1, b1, w2, b2):
    """Pad / cast weights once so each forward call pays no prep cost.

    w1: (1350, 128) f32, b1: (1, 128) f32
        -> w1_p (1408, 128) bf16 with row 1350 = b1 (bias fold), rows 1351.. = 0
    w2: (128, 5) f32 -> (128, 128) bf16 (zero cols beyond 5)
    b2: (1, 5)   f32 -> (1, 128)   f32  (zero cols beyond 5)
    """
    w1_aug = jnp.concatenate([w1, b1], axis=0).astype(jnp.bfloat16)   # (1351, 128)
    w1_p = jnp.pad(w1_aug, ((0, K_PAD - (K_IN + 1)), (0, 0)))
    w2_p = jnp.pad(w2.astype(jnp.bfloat16), ((0, 0), (0, N_PAD - N_OUT)))
    b2_p = jnp.pad(b2.astype(jnp.float32), ((0, 0), (0, N_PAD - N_OUT)))
    return w1_p, w2_p, b2_p


@jax.jit
def mymodel_test_forward(x_nchw, packed_params):
    """x_nchw: (B, C, H, W) with C*H*W == 1350. Returns (B, 5) float32."""
    w1_p, w2_p, b2_p = packed_params
    B = x_nchw.shape[0]
    x_flat = x_nchw.reshape(B, -1)            # torch.nn.Flatten on NCHW, row-major
    assert x_flat.shape[1] == K_IN, x_flat.shape

    m_pad = max(M_MIN, ((B + M_MIN - 1) // M_MIN) * M_MIN)

    # Append the bias column (1.0) then zero-pad to (m_pad, K_PAD); fuses under jit.
    x_aug = jnp.concatenate(
        [x_flat.astype(jnp.bfloat16), jnp.ones((B, 1), jnp.bfloat16)], axis=1)
    x_p = jnp.pad(x_aug, ((0, m_pad - B), (0, K_PAD - (K_IN + 1))))

    out_padded = pl.pallas_call(
        _mlp_kernel,
        out_shape=jax.ShapeDtypeStruct((m_pad, N_PAD), jnp.float32),
        # Single grid point; every operand's block is the full array.
        in_specs=[
            pl.BlockSpec(x_p.shape, lambda: (0, 0)),
            pl.BlockSpec(w1_p.shape, lambda: (0, 0)),
            pl.BlockSpec(w2_p.shape, lambda: (0, 0)),
            pl.BlockSpec(b2_p.shape, lambda: (0, 0)),
        ],
        out_specs=pl.BlockSpec((m_pad, N_PAD), lambda: (0, 0)),
    )(x_p, w1_p, w2_p, b2_p)

    return out_padded[:B, :N_OUT]


def init_params(key):
    """Deterministic init matching torch.nn.Linear default:
    U(-1/sqrt(fan_in), 1/sqrt(fan_in)) for both weight and bias.
    Weights stored as (in, out) so the kernel computes y = x @ W + b."""
    k1, k2, k3, k4 = jax.random.split(key, 4)
    bound1 = 1.0 / (K_IN ** 0.5)
    bound2 = 1.0 / (H1 ** 0.5)
    w1 = jax.random.uniform(k1, (K_IN, H1), jnp.float32, -bound1, bound1)
    b1 = jax.random.uniform(k2, (1, H1), jnp.float32, -bound1, bound1)
    w2 = jax.random.uniform(k3, (H1, N_OUT), jnp.float32, -bound2, bound2)
    b2 = jax.random.uniform(k4, (1, N_OUT), jnp.float32, -bound2, bound2)
    return w1, b1, w2, b2


if __name__ == "__main__":
    key = jax.random.PRNGKey(0)
    k_x, k_p = jax.random.split(key)

    # small NCHW input whose flatten matches fc1's in_features: 6*15*15 = 1350
    x = jax.random.normal(k_x, (2, 6, 15, 15), jnp.float32)
    w1, b1, w2, b2 = init_params(k_p)
    packed = pack_params(w1, b1, w2, b2)

    out = mymodel_test_forward(x, packed)
    out = jax.block_until_ready(out)
    assert out.shape == (2, N_OUT), out.shape

    # Reference 1: apply the same bf16 rounding as the kernel (x, w1, b1, h, w2
    # rounded to bf16), f32 accumulation.
    def _bf(a):
        return a.astype(jnp.bfloat16).astype(jnp.float32)

    x_flat = x.reshape(x.shape[0], -1)
    h_ref = jnp.maximum(_bf(x_flat) @ _bf(w1) + _bf(b1), 0.0)
    ref_bf16 = _bf(h_ref) @ _bf(w2) + b2
    assert jnp.allclose(out, ref_bf16, atol=2e-3, rtol=2e-3), \
        "mismatch vs bf16-consistent reference"

    # Reference 2: full-f32 reference, loose tolerance (bf16 rounding in kernel).
    ref_f32 = jnp.maximum(x_flat @ w1 + b1, 0.0) @ w2 + b2
    assert jnp.allclose(out, ref_f32, atol=5e-2, rtol=5e-2), \
        "mismatch vs f32 reference"

    print("KERNEL_OK")
</pallas_src>

<mosaic_0001>
module attributes {stable_mosaic.version = 11 : i64} {
  func.func @_mlp_kernel(%arg0: memref<8x1408xbf16, #tpu.memory_space<vmem>>, %arg1: memref<1408x128xbf16, #tpu.memory_space<vmem>>, %arg2: memref<128x128xbf16, #tpu.memory_space<vmem>>, %arg3: memref<1x128xf32, #tpu.memory_space<vmem>>, %arg4: memref<8x128xf32, #tpu.memory_space<vmem>>) attributes {dimension_semantics = [], scalar_prefetch = 0 : i64, scratch_operands = 0 : i64, tpu.core_type = #tpu.core_type<tc>} {
    %c0 = arith.constant 0 : index
    %c0_0 = arith.constant 0 : index
    %0 = vector.load %arg0[%c0, %c0_0] : memref<8x1408xbf16, #tpu.memory_space<vmem>>, vector<8x1408xbf16>
    %c0_1 = arith.constant 0 : index
    %c0_2 = arith.constant 0 : index
    %1 = vector.load %arg1[%c0_1, %c0_2] : memref<1408x128xbf16, #tpu.memory_space<vmem>>, vector<1408x128xbf16>
    %cst = arith.constant dense<0.000000e+00> : vector<8x128xf32>
    %2 = tpu.matmul %0, %1, %cst {dimension_numbers = #tpu.dot_dimension_numbers<[1], [0], [0], [1], [0, 0, 1, 1], [], []>} : vector<8x1408xbf16>, vector<1408x128xbf16>, vector<8x128xf32> -> vector<8x128xf32>
    %cst_3 = arith.constant 0.000000e+00 : f32
    %3 = vector.broadcast %cst_3 : f32 to vector<8x128xf32>
    %4 = arith.maximumf %2, %3 : vector<8x128xf32>
    %5 = arith.truncf %4 : vector<8x128xf32> to vector<8x128xbf16>
    %c0_4 = arith.constant 0 : index
    %c0_5 = arith.constant 0 : index
    %6 = vector.load %arg2[%c0_4, %c0_5] : memref<128x128xbf16, #tpu.memory_space<vmem>>, vector<128x128xbf16>
    %cst_6 = arith.constant dense<0.000000e+00> : vector<8x128xf32>
    %7 = tpu.matmul %5, %6, %cst_6 {dimension_numbers = #tpu.dot_dimension_numbers<[1], [0], [0], [1], [0, 0, 1, 1], [], []>} : vector<8x128xbf16>, vector<128x128xbf16>, vector<8x128xf32> -> vector<8x128xf32>
    %c0_7 = arith.constant 0 : index
    %c0_8 = arith.constant 0 : index
    %8 = vector.load %arg3[%c0_7, %c0_8] : memref<1x128xf32, #tpu.memory_space<vmem>>, vector<1x128xf32>
    %9 = vector.broadcast %8 : vector<1x128xf32> to vector<8x128xf32>
    %10 = arith.addf %7, %9 : vector<8x128xf32>
    %c0_9 = arith.constant 0 : index
    %c0_10 = arith.constant 0 : index
    %11 = vector.load %arg4[%c0_9, %c0_10] : memref<8x128xf32, #tpu.memory_space<vmem>>, vector<8x128xf32>
    tpu.vector_store %arg4[%c0_9, %c0_10], %10 {strides = array<i32>} : memref<8x128xf32, #tpu.memory_space<vmem>>, vector<8x128xf32>,
    return
  }
}

</mosaic_0001>

<llo_original>
// kernel: mymodel_test_forward.1
$region0: #{mymodel_test_forward.1}
  #allocation0 [shape = 'u32[]', space=smem, size = 0x4, offset = 0x4, fixed_abs, tag = 'smem constant byte address 0x4 - core index']
  #allocation1 [shape = 'u32[144,128]{1,0:T(1,128)}', space=vmem, size = 0x12000, scoped, tag = 'internal scratch']
  %s0 = inlined_call_operand.vmem [shape: bf16[8,1408], index: 0, kind: input, shape index: {}]
  %s1 = inlined_call_operand.hbm [shape: bf16[1408,128], index: 1, kind: input, shape index: {}]
  %s2 = inlined_call_operand.vmem [shape: bf16[128,128], index: 2, kind: input, shape index: {}]
  %s3 = inlined_call_operand.vmem [shape: f32[1,128], index: 3, kind: input, shape index: {}]
  %s4 = inlined_call_operand.vmem [shape: f32[8,128], index: 4, kind: output, shape index: {}]
  %s5 = sld [smem:[#allocation0]]
  $region30: #{mymodel_test_forward.1} parent=0
    _
  %s7 = ssub.s32 1, %s5
  %s8 = scalar_select 0, %s7, %s5
  $region1: #{mymodel_test_forward.1} parent=0
    #allocation2 [shape = 'u8[360448]{0}', space=vmem, size = 0x58000, scoped, tag = 'input window, operand 1, single buffered']
    #allocation3 [shape = 's32[1]{0}', space=sflag, size = 0x4, scoped, tag = 'scoped memory for mymodel_test_forward.1']
    %9 = vsyncpa [#allocation3], 0
    // Predicated region
    $region2: #{mymodel_test_forward.1} parent=1 // pred_check
      _
    $region3: #{mymodel_test_forward.1} parent=1 // pred_check_branch
      %11 = sbr.rel (0) target = $region5
    $region4: #{mymodel_test_forward.1} parent=1 // pred_region
      _
    $region5: #{mymodel_test_forward.1} parent=1 // pred_fallthru
      _
    // Predicated region
    $region6: #{mymodel_test_forward.1} parent=1 // pred_check
      _
    $region7: #{mymodel_test_forward.1} parent=1 // pred_check_branch
      %13 = sbr.rel (0) target = $region9
    $region8: #{mymodel_test_forward.1} parent=1 // pred_region
      %s15 = ssub.s32 11264, 11264
      %16 = vsyncadd [#allocation3], %s15
      %s17 = sshll.u32 [#allocation2], 4
      %s18 = int_to_ptr.vmem [resolvable:$true] %s17
      %23 = dma.hbm_to_vmem [thread:$0]  %s1, 11264, %s18, [#allocation3], 64, 64, 4
    $region9: #{mymodel_test_forward.1} parent=1 // pred_fallthru
      _
    // Predicated region
    $region10: #{mymodel_test_forward.1} parent=1 // pred_check
      _
    $region11: #{mymodel_test_forward.1} parent=1 // pred_check_branch
      %25 = sbr.rel (0) target = $region13
    $region12: #{mymodel_test_forward.1} parent=1 // pred_region
      _
    $region13: #{mymodel_test_forward.1} parent=1 // pred_fallthru
      _
    // Predicated region
    $region14: #{mymodel_test_forward.1} parent=1 // pred_check
      _
    $region15: #{mymodel_test_forward.1} parent=1 // pred_check_branch
      %27 = sbr.rel (0) target = $region17
    $region16: #{mymodel_test_forward.1} parent=1 // pred_region
      _
    $region17: #{mymodel_test_forward.1} parent=1 // pred_fallthru
      _
    // Predicated region
    $region18: #{mymodel_test_forward.1} parent=1 // pred_check
      _
    $region19: #{mymodel_test_forward.1} parent=1 // pred_check_branch
      %29 = sbr.rel (0) target = $region21
    $region20: #{mymodel_test_forward.1} parent=1 // pred_region
      %30 = dma.done [#allocation3], 11264
    $region21: #{mymodel_test_forward.1} parent=1 // pred_fallthru
      _
    %v32 = vld [vmem:[%s0] sm:$0xff]
    %v33 = vld [vmem:[%s0 + $0x8] sm:$0xff]
    %v34 = vld [vmem:[%s0 + $0x10] sm:$0xff]
    %v35 = vld [vmem:[%s0 + $0x18] sm:$0xff]
    %v36 = vld [vmem:[%s0 + $0x20] sm:$0xff]
    %v37 = vld [vmem:[%s0 + $0x28] sm:$0xf]
    %v38 = vld [vmem:[#allocation2] sm:$0xf]
    %v39 = vld [vmem:[#allocation2 + $0x4] sm:$0xf]
    %v40 = vld [vmem:[#allocation2 + $0x8] sm:$0xf]
    %v41 = vld [vmem:[#allocation2 + $0xc] sm:$0xf]
    %v42 = vld [vmem:[#allocation2 + $0x10] sm:$0xf]
    %v43 = vld [vmem:[#allocation2 + $0x14] sm:$0xf]
    %v44 = vld [vmem:[#allocation2 + $0x18] sm:$0xf]
    %v45 = vld [vmem:[#allocation2 + $0x1c] sm:$0xf]
    %v46 = vld [vmem:[#allocation2 + $0x20] sm:$0xf]
    %v47 = vld [vmem:[#allocation2 + $0x24] sm:$0xf]
    %v48 = vld [vmem:[#allocation2 + $0x28] sm:$0xf]
    %v49 = vld [vmem:[#allocation2 + $0x2c] sm:$0xf]
    %v50 = vld [vmem:[#allocation2 + $0x30] sm:$0xf]
    %v51 = vld [vmem:[#allocation2 + $0x34] sm:$0xf]
    %v52 = vld [vmem:[#allocation2 + $0x38] sm:$0xf]
    %v53 = vld [vmem:[#allocation2 + $0x3c] sm:$0xf]
    %v54 = vld [vmem:[#allocation2 + $0x40] sm:$0xf]
    %v55 = vld [vmem:[#allocation2 + $0x44] sm:$0xf]
    %v56 = vld [vmem:[#allocation2 + $0x48] sm:$0xf]
    %v57 = vld [vmem:[#allocation2 + $0x4c] sm:$0xf]
    %v58 = vld [vmem:[#allocation2 + $0x50] sm:$0xf]
    %v59 = vld [vmem:[#allocation2 + $0x54] sm:$0xf]
    %v60 = vld [vmem:[#allocation2 + $0x58] sm:$0xf]
    %v61 = vld [vmem:[#allocation2 + $0x5c] sm:$0xf]
    %v62 = vld [vmem:[#allocation2 + $0x60] sm:$0xf]
    %v63 = vld [vmem:[#allocation2 + $0x64] sm:$0xf]
    %v64 = vld [vmem:[#allocation2 + $0x68] sm:$0xf]
    %v65 = vld [vmem:[#allocation2 + $0x6c] sm:$0xf]
    %v66 = vld [vmem:[#allocation2 + $0x70] sm:$0xf]
    %v67 = vld [vmem:[#allocation2 + $0x74] sm:$0xf]
    %v68 = vld [vmem:[#allocation2 + $0x78] sm:$0xf]
    %v69 = vld [vmem:[#allocation2 + $0x7c] sm:$0xf]
    %v70 = vld [vmem:[#allocation2 + $0x80] sm:$0xf]
    %v71 = vld [vmem:[#allocation2 + $0x84] sm:$0xf]
    %v72 = vld [vmem:[#allocation2 + $0x88] sm:$0xf]
    %v73 = vld [vmem:[#allocation2 + $0x8c] sm:$0xf]
    %v74 = vld [vmem:[#allocation2 + $0x90] sm:$0xf]
    %v75 = vld [vmem:[#allocation2 + $0x94] sm:$0xf]
    %v76 = vld [vmem:[#allocation2 + $0x98] sm:$0xf]
    %v77 = vld [vmem:[#allocation2 + $0x9c] sm:$0xf]
    %v78 = vld [vmem:[#allocation2 + $0xa0] sm:$0xf]
    %v79 = vld [vmem:[#allocation2 + $0xa4] sm:$0xf]
    %v80 = vld [vmem:[#allocation2 + $0xa8] sm:$0xf]
    %v81 = vld [vmem:[#allocation2 + $0xac] sm:$0xf]
    %v82 = vld [vmem:[#allocation2 + $0xb0] sm:$0xf]
    %v83 = vld [vmem:[#allocation2 + $0xb4] sm:$0xf]
    %v84 = vld [vmem:[#allocation2 + $0xb8] sm:$0xf]
    %v85 = vld [vmem:[#allocation2 + $0xbc] sm:$0xf]
    %v86 = vld [vmem:[#allocation2 + $0xc0] sm:$0xf]
    %v87 = vld [vmem:[#allocation2 + $0xc4] sm:$0xf]
    %v88 = vld [vmem:[#allocation2 + $0xc8] sm:$0xf]
    %v89 = vld [vmem:[#allocation2 + $0xcc] sm:$0xf]
    %v90 = vld [vmem:[#allocation2 + $0xd0] sm:$0xf]
    %v91 = vld [vmem:[#allocation2 + $0xd4] sm:$0xf]
    %v92 = vld [vmem:[#allocation2 + $0xd8] sm:$0xf]
    %v93 = vld [vmem:[#allocation2 + $0xdc] sm:$0xf]
    %v94 = vld [vmem:[#allocation2 + $0xe0] sm:$0xf]
    %v95 = vld [vmem:[#allocation2 + $0xe4] sm:$0xf]
    %v96 = vld [vmem:[#allocation2 + $0xe8] sm:$0xf]
    %v97 = vld [vmem:[#allocation2 + $0xec] sm:$0xf]
    %v98 = vld [vmem:[#allocation2 + $0xf0] sm:$0xf]
    %v99 = vld [vmem:[#allocation2 + $0xf4] sm:$0xf]
    %v100 = vld [vmem:[#allocation2 + $0xf8] sm:$0xf]
    %v101 = vld [vmem:[#allocation2 + $0xfc] sm:$0xf]
    %v102 = vld [vmem:[#allocation2 + $0x100] sm:$0xf]
    %v103 = vld [vmem:[#allocation2 + $0x104] sm:$0xf]
    %v104 = vld [vmem:[#allocation2 + $0x108] sm:$0xf]
    %v105 = vld [vmem:[#allocation2 + $0x10c] sm:$0xf]
    %v106 = vld [vmem:[#allocation2 + $0x110] sm:$0xf]
    %v107 = vld [vmem:[#allocation2 + $0x114] sm:$0xf]
    %v108 = vld [vmem:[#allocation2 + $0x118] sm:$0xf]
    %v109 = vld [vmem:[#allocation2 + $0x11c] sm:$0xf]
    %v110 = vld [vmem:[#allocation2 + $0x120] sm:$0xf]
    %v111 = vld [vmem:[#allocation2 + $0x124] sm:$0xf]
    %v112 = vld [vmem:[#allocation2 + $0x128] sm:$0xf]
    %v113 = vld [vmem:[#allocation2 + $0x12c] sm:$0xf]
    %v114 = vld [vmem:[#allocation2 + $0x130] sm:$0xf]
    %v115 = vld [vmem:[#allocation2 + $0x134] sm:$0xf]
    %v116 = vld [vmem:[#allocation2 + $0x138] sm:$0xf]
    %v117 = vld [vmem:[#allocation2 + $0x13c] sm:$0xf]
    %v118 = vld [vmem:[#allocation2 + $0x140] sm:$0xf]
    %v119 = vld [vmem:[#allocation2 + $0x144] sm:$0xf]
    %v120 = vld [vmem:[#allocation2 + $0x148] sm:$0xf]
    %v121 = vld [vmem:[#allocation2 + $0x14c] sm:$0xf]
    %v122 = vld [vmem:[#allocation2 + $0x150] sm:$0xf]
    %v123 = vld [vmem:[#allocation2 + $0x154] sm:$0xf]
    %v124 = vld [vmem:[#allocation2 + $0x158] sm:$0xf]
    %v125 = vld [vmem:[#allocation2 + $0x15c] sm:$0xf]
    %v126 = vld [vmem:[#allocation2 + $0x160] sm:$0xf]
    %v127 = vld [vmem:[#allocation2 + $0x164] sm:$0xf]
    %v128 = vld [vmem:[#allocation2 + $0x168] sm:$0xf]
    %v129 = vld [vmem:[#allocation2 + $0x16c] sm:$0xf]
    %v130 = vld [vmem:[#allocation2 + $0x170] sm:$0xf]
    %v131 = vld [vmem:[#allocation2 + $0x174] sm:$0xf]
    %v132 = vld [vmem:[#allocation2 + $0x178] sm:$0xf]
    %v133 = vld [vmem:[#allocation2 + $0x17c] sm:$0xf]
    %v134 = vld [vmem:[#allocation2 + $0x180] sm:$0xf]
    %v135 = vld [vmem:[#allocation2 + $0x184] sm:$0xf]
    %v136 = vld [vmem:[#allocation2 + $0x188] sm:$0xf]
    %v137 = vld [vmem:[#allocation2 + $0x18c] sm:$0xf]
    %v138 = vld [vmem:[#allocation2 + $0x190] sm:$0xf]
    %v139 = vld [vmem:[#allocation2 + $0x194] sm:$0xf]
    %v140 = vld [vmem:[#allocation2 + $0x198] sm:$0xf]
    %v141 = vld [vmem:[#allocation2 + $0x19c] sm:$0xf]
    %v142 = vld [vmem:[#allocation2 + $0x1a0] sm:$0xf]
    %v143 = vld [vmem:[#allocation2 + $0x1a4] sm:$0xf]
    %v144 = vld [vmem:[#allocation2 + $0x1a8] sm:$0xf]
    %v145 = vld [vmem:[#allocation2 + $0x1ac] sm:$0xf]
    %v146 = vld [vmem:[#allocation2 + $0x1b0] sm:$0xf]
    %v147 = vld [vmem:[#allocation2 + $0x1b4] sm:$0xf]
    %v148 = vld [vmem:[#allocation2 + $0x1b8] sm:$0xf]
    %v149 = vld [vmem:[#allocation2 + $0x1bc] sm:$0xf]
    %v150 = vld [vmem:[#allocation2 + $0x1c0] sm:$0xf]
    %v151 = vld [vmem:[#allocation2 + $0x1c4] sm:$0xf]
    %v152 = vld [vmem:[#allocation2 + $0x1c8] sm:$0xf]
    %v153 = vld [vmem:[#allocation2 + $0x1cc] sm:$0xf]
    %v154 = vld [vmem:[#allocation2 + $0x1d0] sm:$0xf]
    %v155 = vld [vmem:[#allocation2 + $0x1d4] sm:$0xf]
    %v156 = vld [vmem:[#allocation2 + $0x1d8] sm:$0xf]
    %v157 = vld [vmem:[#allocation2 + $0x1dc] sm:$0xf]
    %v158 = vld [vmem:[#allocation2 + $0x1e0] sm:$0xf]
    %v159 = vld [vmem:[#allocation2 + $0x1e4] sm:$0xf]
    %v160 = vld [vmem:[#allocation2 + $0x1e8] sm:$0xf]
    %v161 = vld [vmem:[#allocation2 + $0x1ec] sm:$0xf]
    %v162 = vld [vmem:[#allocation2 + $0x1f0] sm:$0xf]
    %v163 = vld [vmem:[#allocation2 + $0x1f4] sm:$0xf]
    %v164 = vld [vmem:[#allocation2 + $0x1f8] sm:$0xf]
    %v165 = vld [vmem:[#allocation2 + $0x1fc] sm:$0xf]
    %v166 = vld [vmem:[#allocation2 + $0x200] sm:$0xf]
    %v167 = vld [vmem:[#allocation2 + $0x204] sm:$0xf]
    %v168 = vld [vmem:[#allocation2 + $0x208] sm:$0xf]
    %v169 = vld [vmem:[#allocation2 + $0x20c] sm:$0xf]
    %v170 = vld [vmem:[#allocation2 + $0x210] sm:$0xf]
    %v171 = vld [vmem:[#allocation2 + $0x214] sm:$0xf]
    %v172 = vld [vmem:[#allocation2 + $0x218] sm:$0xf]
    %v173 = vld [vmem:[#allocation2 + $0x21c] sm:$0xf]
    %v174 = vld [vmem:[#allocation2 + $0x220] sm:$0xf]
    %v175 = vld [vmem:[#allocation2 + $0x224] sm:$0xf]
    %v176 = vld [vmem:[#allocation2 + $0x228] sm:$0xf]
    %v177 = vld [vmem:[#allocation2 + $0x22c] sm:$0xf]
    %v178 = vld [vmem:[#allocation2 + $0x230] sm:$0xf]
    %v179 = vld [vmem:[#allocation2 + $0x234] sm:$0xf]
    %v180 = vld [vmem:[#allocation2 + $0x238] sm:$0xf]
    %v181 = vld [vmem:[#allocation2 + $0x23c] sm:$0xf]
    %v182 = vld [vmem:[#allocation2 + $0x240] sm:$0xf]
    %v183 = vld [vmem:[#allocation2 + $0x244] sm:$0xf]
    %v184 = vld [vmem:[#allocation2 + $0x248] sm:$0xf]
    %v185 = vld [vmem:[#allocation2 + $0x24c] sm:$0xf]
    %v186 = vld [vmem:[#allocation2 + $0x250] sm:$0xf]
    %v187 = vld [vmem:[#allocation2 + $0x254] sm:$0xf]
    %v188 = vld [vmem:[#allocation2 + $0x258] sm:$0xf]
    %v189 = vld [vmem:[#allocation2 + $0x25c] sm:$0xf]
    %v190 = vld [vmem:[#allocation2 + $0x260] sm:$0xf]
    %v191 = vld [vmem:[#allocation2 + $0x264] sm:$0xf]
    %v192 = vld [vmem:[#allocation2 + $0x268] sm:$0xf]
    %v193 = vld [vmem:[#allocation2 + $0x26c] sm:$0xf]
    %v194 = vld [vmem:[#allocation2 + $0x270] sm:$0xf]
    %v195 = vld [vmem:[#allocation2 + $0x274] sm:$0xf]
    %v196 = vld [vmem:[#allocation2 + $0x278] sm:$0xf]
    %v197 = vld [vmem:[#allocation2 + $0x27c] sm:$0xf]
    %v198 = vld [vmem:[#allocation2 + $0x280] sm:$0xf]
    %v199 = vld [vmem:[#allocation2 + $0x284] sm:$0xf]
    %v200 = vld [vmem:[#allocation2 + $0x288] sm:$0xf]
    %v201 = vld [vmem:[#allocation2 + $0x28c] sm:$0xf]
    %v202 = vld [vmem:[#allocation2 + $0x290] sm:$0xf]
    %v203 = vld [vmem:[#allocation2 + $0x294] sm:$0xf]
    %v204 = vld [vmem:[#allocation2 + $0x298] sm:$0xf]
    %v205 = vld [vmem:[#allocation2 + $0x29c] sm:$0xf]
    %v206 = vld [vmem:[#allocation2 + $0x2a0] sm:$0xf]
    %v207 = vld [vmem:[#allocation2 + $0x2a4] sm:$0xf]
    %v208 = vld [vmem:[#allocation2 + $0x2a8] sm:$0xf]
    %v209 = vld [vmem:[#allocation2 + $0x2ac] sm:$0xf]
    %v210 = vld [vmem:[#allocation2 + $0x2b0] sm:$0xf]
    %v211 = vld [vmem:[#allocation2 + $0x2b4] sm:$0xf]
    %v212 = vld [vmem:[#allocation2 + $0x2b8] sm:$0xf]
    %v213 = vld [vmem:[#allocation2 + $0x2bc] sm:$0xf]
    %v220 = vunpack.c.l.b16 %v32
    %v221 = vunpack.c.h.b16 %v32
    %v222 = vunpack.c.l.b16 %v33
    %v223 = vunpack.c.h.b16 %v33
    %v224 = vunpack.c.l.b16 %v34
    %v225 = vunpack.c.h.b16 %v34
    %v226 = vunpack.c.l.b16 %v35
    %v227 = vunpack.c.h.b16 %v35
    %v228 = vunpack.c.l.b16 %v36
    %v229 = vunpack.c.h.b16 %v36
    %v230 = vunpack.c.l.b16 %v37
    %v231 = vpack.c.b16 %v220, %v220
    %v232 = vpack.c.b16 %v221, %v221
    %v233 = vpack.c.b16 %v222, %v222
    %v234 = vpack.c.b16 %v223, %v223
    %v235 = vpack.c.b16 %v224, %v224
    %v236 = vpack.c.b16 %v225, %v225
    %v237 = vpack.c.b16 %v226, %v226
    %v238 = vpack.c.b16 %v227, %v227
    %v239 = vpack.c.b16 %v228, %v228
    %v240 = vpack.c.b16 %v229, %v229
    %v241 = vpack.c.b16 %v230, %v230
    %v429 = vunpack.c.l.b16 %v38
    %v430 = vunpack.c.l.b16 %v39
    %v431 = vunpack.c.l.b16 %v40
    %v432 = vunpack.c.l.b16 %v41
    %v433 = vunpack.c.l.b16 %v42
    %v434 = vunpack.c.l.b16 %v43
    %v435 = vunpack.c.l.b16 %v44
    %v436 = vunpack.c.l.b16 %v45
    %v437 = vunpack.c.l.b16 %v46
    %v438 = vunpack.c.l.b16 %v47
    %v439 = vunpack.c.l.b16 %v48
    %v440 = vunpack.c.l.b16 %v49
    %v441 = vunpack.c.l.b16 %v50
    %v442 = vunpack.c.l.b16 %v51
    %v443 = vunpack.c.l.b16 %v52
    %v444 = vunpack.c.l.b16 %v53
    %v445 = vunpack.c.l.b16 %v54
    %v446 = vunpack.c.l.b16 %v55
    %v447 = vunpack.c.l.b16 %v56
    %v448 = vunpack.c.l.b16 %v57
    %v449 = vunpack.c.l.b16 %v58
    %v450 = vunpack.c.l.b16 %v59
    %v451 = vunpack.c.l.b16 %v60
    %v452 = vunpack.c.l.b16 %v61
    %v453 = vunpack.c.l.b16 %v62
    %v454 = vunpack.c.l.b16 %v63
    %v455 = vunpack.c.l.b16 %v64
    %v456 = vunpack.c.l.b16 %v65
    %v457 = vunpack.c.l.b16 %v66
    %v458 = vunpack.c.l.b16 %v67
    %v459 = vunpack.c.l.b16 %v68
    %v460 = vunpack.c.l.b16 %v69
    %v461 = vunpack.c.l.b16 %v70
    %v462 = vunpack.c.l.b16 %v71
    %v463 = vunpack.c.l.b16 %v72
    %v464 = vunpack.c.l.b16 %v73
    %v465 = vunpack.c.l.b16 %v74
    %v466 = vunpack.c.l.b16 %v75
    %v467 = vunpack.c.l.b16 %v76
    %v468 = vunpack.c.l.b16 %v77
    %v469 = vunpack.c.l.b16 %v78
    %v470 = vunpack.c.l.b16 %v79
    %v471 = vunpack.c.l.b16 %v80
    %v472 = vunpack.c.l.b16 %v81
    %v473 = vunpack.c.l.b16 %v82
    %v474 = vunpack.c.l.b16 %v83
    %v475 = vunpack.c.l.b16 %v84
    %v476 = vunpack.c.l.b16 %v85
    %v477 = vunpack.c.l.b16 %v86
    %v478 = vunpack.c.l.b16 %v87
    %v479 = vunpack.c.l.b16 %v88
    %v480 = vunpack.c.l.b16 %v89
    %v481 = vunpack.c.l.b16 %v90
    %v482 = vunpack.c.l.b16 %v91
    %v483 = vunpack.c.l.b16 %v92
    %v484 = vunpack.c.l.b16 %v93
    %v485 = vunpack.c.l.b16 %v94
    %v486 = vunpack.c.l.b16 %v95
    %v487 = vunpack.c.l.b16 %v96
    %v488 = vunpack.c.l.b16 %v97
    %v489 = vunpack.c.l.b16 %v98
    %v490 = vunpack.c.l.b16 %v99
    %v491 = vunpack.c.l.b16 %v100
    %v492 = vunpack.c.l.b16 %v101
    %v493 = vunpack.c.l.b16 %v102
    %v494 = vunpack.c.l.b16 %v103
    %v495 = vunpack.c.l.b16 %v104
    %v496 = vunpack.c.l.b16 %v105
    %v497 = vunpack.c.l.b16 %v106
    %v498 = vunpack.c.l.b16 %v107
    %v499 = vunpack.c.l.b16 %v108
    %v500 = vunpack.c.l.b16 %v109
    %v501 = vunpack.c.l.b16 %v110
    %v502 = vunpack.c.l.b16 %v111
    %v503 = vunpack.c.l.b16 %v112
    %v504 = vunpack.c.l.b16 %v113
    %v505 = vunpack.c.l.b16 %v114
    %v506 = vunpack.c.l.b16 %v115
    %v507 = vunpack.c.l.b16 %v116
    %v508 = vunpack.c.l.b16 %v117
    %v509 = vunpack.c.l.b16 %v118
    %v510 = vunpack.c.l.b16 %v119
    %v511 = vunpack.c.l.b16 %v120
    %v512 = vunpack.c.l.b16 %v121
    %v513 = vunpack.c.l.b16 %v122
    %v514 = vunpack.c.l.b16 %v123
    %v515 = vunpack.c.l.b16 %v124
    %v516 = vunpack.c.l.b16 %v125
    %v517 = vunpack.c.l.b16 %v126
    %v518 = vunpack.c.l.b16 %v127
    %v519 = vunpack.c.l.b16 %v128
    %v520 = vunpack.c.l.b16 %v129
    %v521 = vunpack.c.l.b16 %v130
    %v522 = vunpack.c.l.b16 %v131
    %v523 = vunpack.c.l.b16 %v132
    %v524 = vunpack.c.l.b16 %v133
    %v525 = vunpack.c.l.b16 %v134
    %v526 = vunpack.c.l.b16 %v135
    %v527 = vunpack.c.l.b16 %v136
    %v528 = vunpack.c.l.b16 %v137
    %v529 = vunpack.c.l.b16 %v138
    %v530 = vunpack.c.l.b16 %v139
    %v531 = vunpack.c.l.b16 %v140
    %v532 = vunpack.c.l.b16 %v141
    %v533 = vunpack.c.l.b16 %v142
    %v534 = vunpack.c.l.b16 %v143
    %v535 = vunpack.c.l.b16 %v144
    %v536 = vunpack.c.l.b16 %v145
    %v537 = vunpack.c.l.b16 %v146
    %v538 = vunpack.c.l.b16 %v147
    %v539 = vunpack.c.l.b16 %v148
    %v540 = vunpack.c.l.b16 %v149
    %v541 = vunpack.c.l.b16 %v150
    %v542 = vunpack.c.l.b16 %v151
    %v543 = vunpack.c.l.b16 %v152
    %v544 = vunpack.c.l.b16 %v153
    %v545 = vunpack.c.l.b16 %v154
    %v546 = vunpack.c.l.b16 %v155
    %v547 = vunpack.c.l.b16 %v156
    %v548 = vunpack.c.l.b16 %v157
    %v549 = vunpack.c.l.b16 %v158
    %v550 = vunpack.c.l.b16 %v159
    %v551 = vunpack.c.l.b16 %v160
    %v552 = vunpack.c.l.b16 %v161
    %v553 = vunpack.c.l.b16 %v162
    %v554 = vunpack.c.l.b16 %v163
    %v555 = vunpack.c.l.b16 %v164
    %v556 = vunpack.c.l.b16 %v165
    %v557 = vunpack.c.l.b16 %v166
    %v558 = vunpack.c.l.b16 %v167
    %v559 = vunpack.c.l.b16 %v168
    %v560 = vunpack.c.l.b16 %v169
    %v561 = vunpack.c.l.b16 %v170
    %v562 = vunpack.c.l.b16 %v171
    %v563 = vunpack.c.l.b16 %v172
    %v564 = vunpack.c.l.b16 %v173
    %v565 = vunpack.c.l.b16 %v174
    %v566 = vunpack.c.l.b16 %v175
    %v567 = vunpack.c.l.b16 %v176
    %v568 = vunpack.c.l.b16 %v177
    %v569 = vunpack.c.l.b16 %v178
    %v570 = vunpack.c.l.b16 %v179
    %v571 = vunpack.c.l.b16 %v180
    %v572 = vunpack.c.l.b16 %v181
    %v573 = vunpack.c.l.b16 %v182
    %v574 = vunpack.c.l.b16 %v183
    %v575 = vunpack.c.l.b16 %v184
    %v576 = vunpack.c.l.b16 %v185
    %v577 = vunpack.c.l.b16 %v186
    %v578 = vunpack.c.l.b16 %v187
    %v579 = vunpack.c.l.b16 %v188
    %v580 = vunpack.c.l.b16 %v189
    %v581 = vunpack.c.l.b16 %v190
    %v582 = vunpack.c.l.b16 %v191
    %v583 = vunpack.c.l.b16 %v192
    %v584 = vunpack.c.l.b16 %v193
    %v585 = vunpack.c.l.b16 %v194
    %v586 = vunpack.c.l.b16 %v195
    %v587 = vunpack.c.l.b16 %v196
    %v588 = vunpack.c.l.b16 %v197
    %v589 = vunpack.c.l.b16 %v198
    %v590 = vunpack.c.l.b16 %v199
    %v591 = vunpack.c.l.b16 %v200
    %v592 = vunpack.c.l.b16 %v201
    %v593 = vunpack.c.l.b16 %v202
    %v594 = vunpack.c.l.b16 %v203
    %v595 = vunpack.c.l.b16 %v204
    %v596 = vunpack.c.l.b16 %v205
    %v597 = vunpack.c.l.b16 %v206
    %v598 = vunpack.c.l.b16 %v207
    %v599 = vunpack.c.l.b16 %v208
    %v600 = vunpack.c.l.b16 %v209
    %v601 = vunpack.c.l.b16 %v210
    %v602 = vunpack.c.l.b16 %v211
    %v603 = vunpack.c.l.b16 %v212
    %v604 = vunpack.c.l.b16 %v213
    %v605 = vpack.c.b16 %v430, %v429
    %v606 = vpack.c.b16 %v432, %v431
    %v607 = vpack.c.b16 %v434, %v433
    %v608 = vpack.c.b16 %v436, %v435
    %v609 = vpack.c.b16 %v438, %v437
    %v610 = vpack.c.b16 %v440, %v439
    %v611 = vpack.c.b16 %v442, %v441
    %v612 = vpack.c.b16 %v444, %v443
    %v613 = vpack.c.b16 %v446, %v445
    %v614 = vpack.c.b16 %v448, %v447
    %v615 = vpack.c.b16 %v450, %v449
    %v616 = vpack.c.b16 %v452, %v451
    %v617 = vpack.c.b16 %v454, %v453
    %v618 = vpack.c.b16 %v456, %v455
    %v619 = vpack.c.b16 %v458, %v457
    %v620 = vpack.c.b16 %v460, %v459
    %v621 = vpack.c.b16 %v462, %v461
    %v622 = vpack.c.b16 %v464, %v463
    %v623 = vpack.c.b16 %v466, %v465
    %v624 = vpack.c.b16 %v468, %v467
    %v625 = vpack.c.b16 %v470, %v469
    %v626 = vpack.c.b16 %v472, %v471
    %v627 = vpack.c.b16 %v474, %v473
    %v628 = vpack.c.b16 %v476, %v475
    %v629 = vpack.c.b16 %v478, %v477
    %v630 = vpack.c.b16 %v480, %v479
    %v631 = vpack.c.b16 %v482, %v481
    %v632 = vpack.c.b16 %v484, %v483
    %v633 = vpack.c.b16 %v486, %v485
    %v634 = vpack.c.b16 %v488, %v487
    %v635 = vpack.c.b16 %v490, %v489
    %v636 = vpack.c.b16 %v492, %v491
    %v637 = vpack.c.b16 %v494, %v493
    %v638 = vpack.c.b16 %v496, %v495
    %v639 = vpack.c.b16 %v498, %v497
    %v640 = vpack.c.b16 %v500, %v499
    %v641 = vpack.c.b16 %v502, %v501
    %v642 = vpack.c.b16 %v504, %v503
    %v643 = vpack.c.b16 %v506, %v505
    %v644 = vpack.c.b16 %v508, %v507
    %v645 = vpack.c.b16 %v510, %v509
    %v646 = vpack.c.b16 %v512, %v511
    %v647 = vpack.c.b16 %v514, %v513
    %v648 = vpack.c.b16 %v516, %v515
    %v649 = vpack.c.b16 %v518, %v517
    %v650 = vpack.c.b16 %v520, %v519
    %v651 = vpack.c.b16 %v522, %v521
    %v652 = vpack.c.b16 %v524, %v523
    %v653 = vpack.c.b16 %v526, %v525
    %v654 = vpack.c.b16 %v528, %v527
    %v655 = vpack.c.b16 %v530, %v529
    %v656 = vpack.c.b16 %v532, %v531
    %v657 = vpack.c.b16 %v534, %v533
    %v658 = vpack.c.b16 %v536, %v535
    %v659 = vpack.c.b16 %v538, %v537
    %v660 = vpack.c.b16 %v540, %v539
    %v661 = vpack.c.b16 %v542, %v541
    %v662 = vpack.c.b16 %v544, %v543
    %v663 = vpack.c.b16 %v546, %v545
    %v664 = vpack.c.b16 %v548, %v547
    %v665 = vpack.c.b16 %v550, %v549
    %v666 = vpack.c.b16 %v552, %v551
    %v667 = vpack.c.b16 %v554, %v553
    %v668 = vpack.c.b16 %v556, %v555
    %v669 = vpack.c.b16 %v558, %v557
    %v670 = vpack.c.b16 %v560, %v559
    %v671 = vpack.c.b16 %v562, %v561
    %v672 = vpack.c.b16 %v564, %v563
    %v673 = vpack.c.b16 %v566, %v565
    %v674 = vpack.c.b16 %v568, %v567
    %v675 = vpack.c.b16 %v570, %v569
    %v676 = vpack.c.b16 %v572, %v571
    %v677 = vpack.c.b16 %v574, %v573
    %v678 = vpack.c.b16 %v576, %v575
    %v679 = vpack.c.b16 %v578, %v577
    %v680 = vpack.c.b16 %v580, %v579
    %v681 = vpack.c.b16 %v582, %v581
    %v682 = vpack.c.b16 %v584, %v583
    %v683 = vpack.c.b16 %v586, %v585
    %v684 = vpack.c.b16 %v588, %v587
    %v685 = vpack.c.b16 %v590, %v589
    %v686 = vpack.c.b16 %v592, %v591
    %v687 = vpack.c.b16 %v594, %v593
    %v688 = vpack.c.b16 %v596, %v595
    %v689 = vpack.c.b16 %v598, %v597
    %v690 = vpack.c.b16 %v600, %v599
    %v691 = vpack.c.b16 %v602, %v601
    %v692 = vpack.c.b16 %v604, %v603
    %781 = vmatprep.subr.bf16.mxu0 0
    %782 = vmatpush1.bf16.msra.mxu0 %v612
    %783 = vmatprep.subr.bf16.mxu0 0
    %784 = vmatpush1.bf16.msra.mxu0 %v611
    %785 = vmatprep.subr.bf16.mxu0 0
    %786 = vmatpush1.bf16.msra.mxu0 %v610
    %787 = vmatprep.subr.bf16.mxu0 0
    %788 = vmatpush1.bf16.msra.mxu0 %v609
    %789 = vmatprep.subr.bf16.mxu0 0
    %790 = vmatpush1.bf16.msra.mxu0 %v608
    %791 = vmatprep.subr.bf16.mxu0 0
    %792 = vmatpush1.bf16.msra.mxu0 %v607
    %793 = vmatprep.subr.bf16.mxu0 0
    %794 = vmatpush1.bf16.msra.mxu0 %v606
    %795 = vmatprep.subr.bf16.mxu0 0
    %796 = vmatpush1.bf16.msra.mxu0 %v605
    %797 = vmatprep.subr.bf16.mxu0 0
    %798 = vmatpush2.bf16.msra.mxu0 %v620
    %799 = vmatprep.subr.bf16.mxu0 0
    %800 = vmatpush2.bf16.msra.mxu0 %v619
    %801 = vmatprep.subr.bf16.mxu0 0
    %802 = vmatpush2.bf16.msra.mxu0 %v618
    %803 = vmatprep.subr.bf16.mxu0 0
    %804 = vmatpush2.bf16.msra.mxu0 %v617
    %805 = vmatprep.subr.bf16.mxu0 0
    %806 = vmatpush2.bf16.msra.mxu0 %v616
    %807 = vmatprep.subr.bf16.mxu0 0
    %808 = vmatpush2.bf16.msra.mxu0 %v615
    %809 = vmatprep.subr.bf16.mxu0 0
    %810 = vmatpush2.bf16.msra.mxu0 %v614
    %811 = vmatprep.subr.bf16.mxu0 0
    %812 = vmatpush2.bf16.msra.mxu0 %v613
    %813 = vmatprep.mubr.bf16.mxu0 %v232
    %814 = vmatmul.mubr.bf16.gmra.mxu0 %v231
    %v815 = vpop.f32.mrf.mxu0
    %v816 = vadd.f32 0.0, %v815
    %v817 = vpop.f32.mrf.mxu0
    %v818 = vpop.f32.mrf.mxu0
    %v819 = vpop.f32.mrf.mxu0
    %820 = vdwg.mxu0
    %821 = vmatprep.subr.bf16.mxu0 0
    %822 = vmatpush1.bf16.msra.mxu0 %v628
    %823 = vmatprep.subr.bf16.mxu0 0
    %824 = vmatpush1.bf16.msra.mxu0 %v627
    %825 = vmatprep.subr.bf16.mxu0 0
    %826 = vmatpush1.bf16.msra.mxu0 %v626
    %827 = vmatprep.subr.bf16.mxu0 0
    %828 = vmatpush1.bf16.msra.mxu0 %v625
    %829 = vmatprep.subr.bf16.mxu0 0
    %830 = vmatpush1.bf16.msra.mxu0 %v624
    %831 = vmatprep.subr.bf16.mxu0 0
    %832 = vmatpush1.bf16.msra.mxu0 %v623
    %833 = vmatprep.subr.bf16.mxu0 0
    %834 = vmatpush1.bf16.msra.mxu0 %v622
    %835 = vmatprep.subr.bf16.mxu0 0
    %836 = vmatpush1.bf16.msra.mxu0 %v621
    %837 = vmatprep.subr.bf16.mxu0 0
    %838 = vmatpush2.bf16.msra.mxu0 %v636
    %839 = vmatprep.subr.bf16.mxu0 0
    %840 = vmatpush2.bf16.msra.mxu0 %v635
    %841 = vmatprep.subr.bf16.mxu0 0
    %842 = vmatpush2.bf16.msra.mxu0 %v634
    %843 = vmatprep.subr.bf16.mxu0 0
    %844 = vmatpush2.bf16.msra.mxu0 %v633
    %845 = vmatprep.subr.bf16.mxu0 0
    %846 = vmatpush2.bf16.msra.mxu0 %v632
    %847 = vmatprep.subr.bf16.mxu0 0
    %848 = vmatpush2.bf16.msra.mxu0 %v631
    %849 = vmatprep.subr.bf16.mxu0 0
    %850 = vmatpush2.bf16.msra.mxu0 %v630
    %851 = vmatprep.subr.bf16.mxu0 0
    %852 = vmatpush2.bf16.msra.mxu0 %v629
    %853 = vmatprep.mubr.bf16.mxu0 %v234
    %854 = vmatmul.mubr.bf16.gmra.mxu0 %v233
    %v855 = vpop.f32.mrf.mxu0
    %v856 = vadd.f32 %v816, %v855
    %v857 = vpop.f32.mrf.mxu0
    %v858 = vpop.f32.mrf.mxu0
    %v859 = vpop.f32.mrf.mxu0
    %860 = vdwg.mxu0
    %861 = vmatprep.subr.bf16.mxu0 0
    %862 = vmatpush1.bf16.msra.mxu0 %v644
    %863 = vmatprep.subr.bf16.mxu0 0
    %864 = vmatpush1.bf16.msra.mxu0 %v643
    %865 = vmatprep.subr.bf16.mxu0 0
    %866 = vmatpush1.bf16.msra.mxu0 %v642
    %867 = vmatprep.subr.bf16.mxu0 0
    %868 = vmatpush1.bf16.msra.mxu0 %v641
    %869 = vmatprep.subr.bf16.mxu0 0
    %870 = vmatpush1.bf16.msra.mxu0 %v640
    %871 = vmatprep.subr.bf16.mxu0 0
    %872 = vmatpush1.bf16.msra.mxu0 %v639
    %873 = vmatprep.subr.bf16.mxu0 0
    %874 = vmatpush1.bf16.msra.mxu0 %v638
    %875 = vmatprep.subr.bf16.mxu0 0
    %876 = vmatpush1.bf16.msra.mxu0 %v637
    %877 = vmatprep.subr.bf16.mxu0 0
    %878 = vmatpush2.bf16.msra.mxu0 %v652
    %879 = vmatprep.subr.bf16.mxu0 0
    %880 = vmatpush2.bf16.msra.mxu0 %v651
    %881 = vmatprep.subr.bf16.mxu0 0
    %882 = vmatpush2.bf16.msra.mxu0 %v650
    %883 = vmatprep.subr.bf16.mxu0 0
    %884 = vmatpush2.bf16.msra.mxu0 %v649
    %885 = vmatprep.subr.bf16.mxu0 0
    %886 = vmatpush2.bf16.msra.mxu0 %v648
    %887 = vmatprep.subr.bf16.mxu0 0
    %888 = vmatpush2.bf16.msra.mxu0 %v647
    %889 = vmatprep.subr.bf16.mxu0 0
    %890 = vmatpush2.bf16.msra.mxu0 %v646
    %891 = vmatprep.subr.bf16.mxu0 0
    %892 = vmatpush2.bf16.msra.mxu0 %v645
    %893 = vmatprep.mubr.bf16.mxu0 %v236
    %894 = vmatmul.mubr.bf16.gmra.mxu0 %v235
    %v895 = vpop.f32.mrf.mxu0
    %v896 = vadd.f32 %v856, %v895
    %v897 = vpop.f32.mrf.mxu0
    %v898 = vpop.f32.mrf.mxu0
    %v899 = vpop.f32.mrf.mxu0
    %900 = vdwg.mxu0
    %901 = vmatprep.subr.bf16.mxu0 0
    %902 = vmatpush1.bf16.msra.mxu0 %v660
    %903 = vmatprep.subr.bf16.mxu0 0
    %904 = vmatpush1.bf16.msra.mxu0 %v659
    %905 = vmatprep.subr.bf16.mxu0 0
    %906 = vmatpush1.bf16.msra.mxu0 %v658
    %907 = vmatprep.subr.bf16.mxu0 0
    %908 = vmatpush1.bf16.msra.mxu0 %v657
    %909 = vmatprep.subr.bf16.mxu0 0
    %910 = vmatpush1.bf16.msra.mxu0 %v656
    %911 = vmatprep.subr.bf16.mxu0 0
    %912 = vmatpush1.bf16.msra.mxu0 %v655
    %913 = vmatprep.subr.bf16.mxu0 0
    %914 = vmatpush1.bf16.msra.mxu0 %v654
    %915 = vmatprep.subr.bf16.mxu0 0
    %916 = vmatpush1.bf16.msra.mxu0 %v653
    %917 = vmatprep.subr.bf16.mxu0 0
    %918 = vmatpush2.bf16.msra.mxu0 %v668
    %919 = vmatprep.subr.bf16.mxu0 0
    %920 = vmatpush2.bf16.msra.mxu0 %v667
    %921 = vmatprep.subr.bf16.mxu0 0
    %922 = vmatpush2.bf16.msra.mxu0 %v666
    %923 = vmatprep.subr.bf16.mxu0 0
    %924 = vmatpush2.bf16.msra.mxu0 %v665
    %925 = vmatprep.subr.bf16.mxu0 0
    %926 = vmatpush2.bf16.msra.mxu0 %v664
    %927 = vmatprep.subr.bf16.mxu0 0
    %928 = vmatpush2.bf16.msra.mxu0 %v663
    %929 = vmatprep.subr.bf16.mxu0 0
    %930 = vmatpush2.bf16.msra.mxu0 %v662
    %931 = vmatprep.subr.bf16.mxu0 0
    %932 = vmatpush2.bf16.msra.mxu0 %v661
    %933 = vmatprep.mubr.bf16.mxu0 %v238
    %934 = vmatmul.mubr.bf16.gmra.mxu0 %v237
    %v935 = vpop.f32.mrf.mxu0
    %v936 = vadd.f32 %v896, %v935
    %v937 = vpop.f32.mrf.mxu0
    %v938 = vpop.f32.mrf.mxu0
    %v939 = vpop.f32.mrf.mxu0
    %940 = vdwg.mxu0
    %941 = vmatprep.subr.bf16.mxu0 0
    %942 = vmatpush1.bf16.msra.mxu0 %v676
    %943 = vmatprep.subr.bf16.mxu0 0
    %944 = vmatpush1.bf16.msra.mxu0 %v675
    %945 = vmatprep.subr.bf16.mxu0 0
    %946 = vmatpush1.bf16.msra.mxu0 %v674
    %947 = vmatprep.subr.bf16.mxu0 0
    %948 = vmatpush1.bf16.msra.mxu0 %v673
    %949 = vmatprep.subr.bf16.mxu0 0
    %950 = vmatpush1.bf16.msra.mxu0 %v672
    %951 = vmatprep.subr.bf16.mxu0 0
    %952 = vmatpush1.bf16.msra.mxu0 %v671
    %953 = vmatprep.subr.bf16.mxu0 0
    %954 = vmatpush1.bf16.msra.mxu0 %v670
    %955 = vmatprep.subr.bf16.mxu0 0
    %956 = vmatpush1.bf16.msra.mxu0 %v669
    %957 = vmatprep.subr.bf16.mxu0 0
    %958 = vmatpush2.bf16.msra.mxu0 %v684
    %959 = vmatprep.subr.bf16.mxu0 0
    %960 = vmatpush2.bf16.msra.mxu0 %v683
    %961 = vmatprep.subr.bf16.mxu0 0
    %962 = vmatpush2.bf16.msra.mxu0 %v682
    %963 = vmatprep.subr.bf16.mxu0 0
    %964 = vmatpush2.bf16.msra.mxu0 %v681
    %965 = vmatprep.subr.bf16.mxu0 0
    %966 = vmatpush2.bf16.msra.mxu0 %v680
    %967 = vmatprep.subr.bf16.mxu0 0
    %968 = vmatpush2.bf16.msra.mxu0 %v679
    %969 = vmatprep.subr.bf16.mxu0 0
    %970 = vmatpush2.bf16.msra.mxu0 %v678
    %971 = vmatprep.subr.bf16.mxu0 0
    %972 = vmatpush2.bf16.msra.mxu0 %v677
    %973 = vmatprep.mubr.bf16.mxu0 %v240
    %974 = vmatmul.mubr.bf16.gmra.mxu0 %v239
    %v975 = vpop.f32.mrf.mxu0
    %v976 = vadd.f32 %v936, %v975
    %v977 = vpop.f32.mrf.mxu0
    %v978 = vpop.f32.mrf.mxu0
    %v979 = vpop.f32.mrf.mxu0
    %980 = vdwg.mxu0
    %981 = vmatprep.subr.bf16.mxu0 0
    %982 = vmatpush1.bf16.msra.mxu0 %v692
    %983 = vmatprep.subr.bf16.mxu0 0
    %984 = vmatpush1.bf16.msra.mxu0 %v691
    %985 = vmatprep.subr.bf16.mxu0 0
    %986 = vmatpush1.bf16.msra.mxu0 %v690
    %987 = vmatprep.subr.bf16.mxu0 0
    %988 = vmatpush1.bf16.msra.mxu0 %v689
    %989 = vmatprep.subr.bf16.mxu0 0
    %990 = vmatpush1.bf16.msra.mxu0 %v688
    %991 = vmatprep.subr.bf16.mxu0 0
    %992 = vmatpush1.bf16.msra.mxu0 %v687
    %993 = vmatprep.subr.bf16.mxu0 0
    %994 = vmatpush1.bf16.msra.mxu0 %v686
    %995 = vmatprep.subr.bf16.mxu0 0
    %996 = vmatpush1.bf16.msra.mxu0 %v685
    %997 = vmatprep.subr.bf16.mxu0 0
    %998 = vmatpush2.bf16.msra.mxu0 0
    %999 = vmatprep.subr.bf16.mxu0 0
    %1000 = vmatpush2.bf16.msra.mxu0 0
    %1001 = vmatprep.subr.bf16.mxu0 0
    %1002 = vmatpush2.bf16.msra.mxu0 0
    %1003 = vmatprep.subr.bf16.mxu0 0
    %1004 = vmatpush2.bf16.msra.mxu0 0
    %1005 = vmatprep.subr.bf16.mxu0 0
    %1006 = vmatpush2.bf16.msra.mxu0 0
    %1007 = vmatprep.subr.bf16.mxu0 0
    %1008 = vmatpush2.bf16.msra.mxu0 0
    %1009 = vmatprep.subr.bf16.mxu0 0
    %1010 = vmatpush2.bf16.msra.mxu0 0
    %1011 = vmatprep.subr.bf16.mxu0 0
    %1012 = vmatpush2.bf16.msra.mxu0 0
    %1013 = vmatprep.mubr.bf16.mxu0 0
    %1014 = vmatmul.mubr.bf16.gmra.mxu0 %v241
    %v1015 = vpop.f32.mrf.mxu0
    %v1016 = vadd.f32 %v976, %v1015
    %v1017 = vpop.f32.mrf.mxu0
    %v1018 = vpop.f32.mrf.mxu0
    %v1019 = vpop.f32.mrf.mxu0
    %1020 = vdwg.mxu0
    %v1021 = vmax.f32 %v1016, 0.0
    %v1022 = vpack.c.bf16 %v1021, %v1021
    %v1023 = vld [vmem:[%s2] sm:$0xf]
    %v1024 = vld [vmem:[%s2 + $0x4] sm:$0xf]
    %v1025 = vld [vmem:[%s2 + $0x8] sm:$0xf]
    %v1026 = vld [vmem:[%s2 + $0xc] sm:$0xf]
    %v1027 = vld [vmem:[%s2 + $0x10] sm:$0xf]
    %v1028 = vld [vmem:[%s2 + $0x14] sm:$0xf]
    %v1029 = vld [vmem:[%s2 + $0x18] sm:$0xf]
    %v1030 = vld [vmem:[%s2 + $0x1c] sm:$0xf]
    %v1031 = vld [vmem:[%s2 + $0x20] sm:$0xf]
    %v1032 = vld [vmem:[%s2 + $0x24] sm:$0xf]
    %v1033 = vld [vmem:[%s2 + $0x28] sm:$0xf]
    %v1034 = vld [vmem:[%s2 + $0x2c] sm:$0xf]
    %v1035 = vld [vmem:[%s2 + $0x30] sm:$0xf]
    %v1036 = vld [vmem:[%s2 + $0x34] sm:$0xf]
    %v1037 = vld [vmem:[%s2 + $0x38] sm:$0xf]
    %v1038 = vld [vmem:[%s2 + $0x3c] sm:$0xf]
    %v1039 = vld [vmem:[%s3] sm:$0x1]
    %v1041 = vlaneseq
    %v1042 = vshrl.u32 %v1041, 7
    %v1043 = vsub.s32 0, %v1042
    %v1044 = vrot.slane %v1039, %v1043
    %v1062 = vunpack.c.l.b16 %v1023
    %v1063 = vunpack.c.l.b16 %v1024
    %v1064 = vunpack.c.l.b16 %v1025
    %v1065 = vunpack.c.l.b16 %v1026
    %v1066 = vunpack.c.l.b16 %v1027
    %v1067 = vunpack.c.l.b16 %v1028
    %v1068 = vunpack.c.l.b16 %v1029
    %v1069 = vunpack.c.l.b16 %v1030
    %v1070 = vunpack.c.l.b16 %v1031
    %v1071 = vunpack.c.l.b16 %v1032
    %v1072 = vunpack.c.l.b16 %v1033
    %v1073 = vunpack.c.l.b16 %v1034
    %v1074 = vunpack.c.l.b16 %v1035
    %v1075 = vunpack.c.l.b16 %v1036
    %v1076 = vunpack.c.l.b16 %v1037
    %v1077 = vunpack.c.l.b16 %v1038
    %v1078 = vpack.c.b16 %v1063, %v1062
    %v1079 = vpack.c.b16 %v1065, %v1064
    %v1080 = vpack.c.b16 %v1067, %v1066
    %v1081 = vpack.c.b16 %v1069, %v1068
    %v1082 = vpack.c.b16 %v1071, %v1070
    %v1083 = vpack.c.b16 %v1073, %v1072
    %v1084 = vpack.c.b16 %v1075, %v1074
    %v1085 = vpack.c.b16 %v1077, %v1076
    %1094 = vmatprep.subr.bf16.mxu0 0
    %1095 = vmatpush1.bf16.msra.mxu0 %v1085
    %1096 = vmatprep.subr.bf16.mxu0 0
    %1097 = vmatpush1.bf16.msra.mxu0 %v1084
    %1098 = vmatprep.subr.bf16.mxu0 0
    %1099 = vmatpush1.bf16.msra.mxu0 %v1083
    %1100 = vmatprep.subr.bf16.mxu0 0
    %1101 = vmatpush1.bf16.msra.mxu0 %v1082
    %1102 = vmatprep.subr.bf16.mxu0 0
    %1103 = vmatpush1.bf16.msra.mxu0 %v1081
    %1104 = vmatprep.subr.bf16.mxu0 0
    %1105 = vmatpush1.bf16.msra.mxu0 %v1080
    %1106 = vmatprep.subr.bf16.mxu0 0
    %1107 = vmatpush1.bf16.msra.mxu0 %v1079
    %1108 = vmatprep.subr.bf16.mxu0 0
    %1109 = vmatpush1.bf16.msra.mxu0 %v1078
    %1110 = vmatprep.subr.bf16.mxu0 0
    %1111 = vmatpush2.bf16.msra.mxu0 0
    %1112 = vmatprep.subr.bf16.mxu0 0
    %1113 = vmatpush2.bf16.msra.mxu0 0
    %1114 = vmatprep.subr.bf16.mxu0 0
    %1115 = vmatpush2.bf16.msra.mxu0 0
    %1116 = vmatprep.subr.bf16.mxu0 0
    %1117 = vmatpush2.bf16.msra.mxu0 0
    %1118 = vmatprep.subr.bf16.mxu0 0
    %1119 = vmatpush2.bf16.msra.mxu0 0
    %1120 = vmatprep.subr.bf16.mxu0 0
    %1121 = vmatpush2.bf16.msra.mxu0 0
    %1122 = vmatprep.subr.bf16.mxu0 0
    %1123 = vmatpush2.bf16.msra.mxu0 0
    %1124 = vmatprep.subr.bf16.mxu0 0
    %1125 = vmatpush2.bf16.msra.mxu0 0
    %1126 = vmatprep.mubr.bf16.mxu0 0
    %1127 = vmatmul.mubr.bf16.gmra.mxu0 %v1022
    %v1128 = vpop.f32.mrf.mxu0
    %v1129 = vadd.f32 %v1044, %v1128
    %v1130 = vpop.f32.mrf.mxu0
    %v1131 = vpop.f32.mrf.mxu0
    %v1132 = vpop.f32.mrf.mxu0
    %1133 = vdwg.mxu0
    %1134 = vst [vmem:[%s4] sm:$0xff] %v1129
    // Predicated region
    $region22: #{mymodel_test_forward.1} parent=1 // pred_check
      _
    $region23: #{mymodel_test_forward.1} parent=1 // pred_check_branch
      %1136 = sbr.rel (0) target = $region25
    $region24: #{mymodel_test_forward.1} parent=1 // pred_region
      _
    $region25: #{mymodel_test_forward.1} parent=1 // pred_fallthru
      _
    // Predicated region
    $region26: #{mymodel_test_forward.1} parent=1 // pred_check
      _
    $region27: #{mymodel_test_forward.1} parent=1 // pred_check_branch
      %1138 = sbr.rel (0) target = $region29
    $region28: #{mymodel_test_forward.1} parent=1 // pred_region
      _
    $region29: #{mymodel_test_forward.1} parent=1 // pred_fallthru
      _
    %1139 = vsyncpa [#allocation3], 1

</llo_original>
